<compile_context>
chip_gen: v6e
topology: v6e:2x2x1
jax: 0.10.0
libtpu: 0.0.40
codegen_flags: <defaults>
</compile_context>

<pallas_src>
import jax
import jax.numpy as jnp
from jax.experimental import pallas as pl
from jax.experimental.pallas import tpu as pltpu


def _round_up(a: int, b: int) -> int:
    return (a + b - 1) // b * b


def _vmem_budget_bytes() -> int:
    """~3/4 of physical VMEM (capped), used as both tile budget and vmem_limit."""
    try:
        cap = int(pltpu.get_tpu_info().vmem_capacity_bytes)
    except Exception:
        cap = 64 << 20  # conservative fallback: v7x physical VMEM per TensorCore
    return min(cap * 3 // 4, 100 << 20)


def _pick_tile(dim: int, desired: int, align: int = 128) -> int:
    """Largest tile <= desired (multiple of `align`) that minimizes padding of `dim`."""
    full = _round_up(dim, align)
    if full <= desired:
        return full  # single block, minimal padding
    best, best_pad = align, None
    t = align
    while t <= desired:
        pad = _round_up(dim, t) - dim
        if best_pad is None or pad < best_pad or (pad == best_pad and t > best):
            best, best_pad = t, pad
        t += align
    return best


def _select_tiles(K, N, *, w_itemsize, x_itemsize=4, o_itemsize=4,
                  tm_hint=1024, tn_hint=512, tk_hint=1024, budget=None):
    """Derive (tm_max, tn, tk) against the chip's VMEM budget."""
    budget = _vmem_budget_bytes() if budget is None else budget
    tn = _pick_tile(N, tn_hint)
    tk = _pick_tile(K, tk_hint)
    tm = tm_hint

    def footprint(tm, tn, tk):
        f = 2 * tm * tk * x_itemsize            # double-buffered x tile
        f += 2 * tk * (2 * tn) * w_itemsize     # double-buffered fused-W tile
        f += 2 * tm * tn * o_itemsize           # double-buffered output tile
        f += tm * (2 * tn) * 4                  # f32 accumulator (multi-K worst case)
        return f

    # Shrink (tm first, then tk, then tn) until the footprint fits the budget.
    while footprint(tm, tn, tk) > budget:
        if tm > 256:
            tm //= 2
        elif tk > 128:
            tk = max(128, _round_up(tk // 2, 128))
        elif tn > 128:
            tn = max(128, _round_up(tn // 2, 128))
        else:
            break
    return tm, tn, tk, budget


def prepare_params(w_transform, w_gate, *, weight_dtype=jnp.bfloat16,
                   tm_hint=1024, tn_hint=512, tk_hint=1024):
    """One-time weight prep (transpose + fuse + pad + dtype cast).

    w_transform / w_gate: PyTorch nn.Linear layout, shape [out_features, in_features].
    Returns (w_fused, meta); w_fused has shape [Kp, n_blocks * 2*tn] where the
    columns of N-block j are [transform block j | gate block j].
    """
    N, K = w_transform.shape
    assert w_gate.shape == (N, K)

    w_itemsize = jnp.dtype(weight_dtype).itemsize
    tm_max, tn, tk, budget = _select_tiles(
        K, N, w_itemsize=w_itemsize,
        tm_hint=tm_hint, tn_hint=tn_hint, tk_hint=tk_hint)

    Np = _round_up(N, tn)
    Kp = _round_up(K, tk)
    nb = Np // tn

    wt = jnp.pad(w_transform, ((0, Np - N), (0, Kp - K)))
    wg = jnp.pad(w_gate, ((0, Np - N), (0, Kp - K)))
    # Transpose to [K, N] once, then interleave per N-block so each grid step
    # reads ONE contiguous (tk, 2*tn) block: [transform_j | gate_j].
    wt_t = wt.T.reshape(Kp, nb, 1, tn)
    wg_t = wg.T.reshape(Kp, nb, 1, tn)
    w_fused = jnp.concatenate([wt_t, wg_t], axis=2).reshape(Kp, nb * 2 * tn)
    w_fused = w_fused.astype(weight_dtype)

    meta = dict(N=N, K=K, Np=Np, Kp=Kp, tn=tn, tk=tk, tm_max=tm_max,
                vmem_limit=budget)
    return w_fused, meta


def _bilinear_gated_kernel_reduce(x_ref, w_ref, o_ref, acc_ref):
    # Grid is (N-block j, batch-block i, K-block k); K is the reduction axis.
    @pl.when(pl.program_id(2) == 0)
    def _init():
        acc_ref[...] = jnp.zeros_like(acc_ref)

    x = x_ref[...]
    if x.dtype != w_ref.dtype:
        x = x.astype(w_ref.dtype)        # bf16 x bf16 MXU matmul, f32 accumulate
    acc_ref[...] += jnp.dot(x, w_ref[...], preferred_element_type=jnp.float32)

    @pl.when(pl.program_id(2) == pl.num_programs(2) - 1)
    def _finalize():
        tn = o_ref.shape[-1]
        y = acc_ref[...]
        o_ref[...] = (y[:, :tn] * y[:, tn:]).astype(o_ref.dtype)


def _bilinear_gated_kernel_single(x_ref, w_ref, o_ref):
    # Whole reduction fits one tile: no accumulator round trip, no pl.when.
    x = x_ref[...]
    if x.dtype != w_ref.dtype:
        x = x.astype(w_ref.dtype)
    y = jnp.dot(x, w_ref[...], preferred_element_type=jnp.float32)
    tn = o_ref.shape[-1]
    o_ref[...] = (y[:, :tn] * y[:, tn:]).astype(o_ref.dtype)


def bilinear_gated_fc(x, w_fused, meta, *, tm=None):
    """x: [B, in_features]; w_fused/meta: output of prepare_params."""
    B, K = x.shape
    assert K == meta["K"], "in_features mismatch"
    N, Np, Kp = meta["N"], meta["Np"], meta["Kp"]
    tn, tk = meta["tn"], meta["tk"]
    tm_max = meta["tm_max"] if tm is None else tm

    x_itemsize = jnp.dtype(x.dtype).itemsize
    sub = 8 * max(1, 4 // x_itemsize)            # sublane packing: 8 f32 / 16 bf16
    tm = min(tm_max, _round_up(B, sub))
    Bp = _round_up(B, tm)

    # The pad is a separate XLA copy of the activation outside the kernel's
    # pipeline; it is skipped whenever B/K are already tile-aligned.
    xp = x if (Bp, Kp) == (B, K) else jnp.pad(x, ((0, Bp - B), (0, Kp - K)))

    nb_n, nb_m, nb_k = Np // tn, Bp // tm, Kp // tk

    # At small batch tiles there is little MXU work to hide the weight DMA
    # behind; deepen the weight pipeline to 3 buffers (one extra weight tile).
    w_index = (lambda j, i: (0, j)) if nb_k == 1 else (lambda j, i, k: (k, j))
    if tm <= 128 and nb_n * nb_m * nb_k >= 4:
        w_spec = pl.BlockSpec((tk, 2 * tn), w_index, pipeline_mode=pl.Buffered(3))
    else:
        w_spec = pl.BlockSpec((tk, 2 * tn), w_index)

    w_itemsize = jnp.dtype(w_fused.dtype).itemsize
    cost = pl.CostEstimate(
        flops=2 * Bp * Kp * (2 * Np) + Bp * Np,   # fused matmul + gating multiply
        transcendentals=0,
        # Count re-streamed traffic: x once per N block, weights once per batch block.
        bytes_accessed=(xp.size * x_itemsize * nb_n
                        + w_fused.size * w_itemsize * nb_m
                        + Bp * Np * x_itemsize),
    )
    compiler_params = pltpu.CompilerParams(
        dimension_semantics=(("parallel", "parallel") if nb_k == 1
                             else ("parallel", "parallel", "arbitrary")),
        vmem_limit_bytes=meta["vmem_limit"],
    )

    if nb_k == 1:
        # Fast path: single K tile -> no accumulator scratch, 2-D grid (N, batch).
        grid_spec = pltpu.PrefetchScalarGridSpec(
            num_scalar_prefetch=0,
            grid=(nb_n, nb_m),
            in_specs=[pl.BlockSpec((tm, tk), lambda j, i: (i, 0)), w_spec],
            out_specs=pl.BlockSpec((tm, tn), lambda j, i: (i, j)),
        )
        kernel = _bilinear_gated_kernel_single
    else:
        grid_spec = pltpu.PrefetchScalarGridSpec(
            num_scalar_prefetch=0,
            grid=(nb_n, nb_m, nb_k),
            in_specs=[pl.BlockSpec((tm, tk), lambda j, i, k: (i, k)), w_spec],
            out_specs=pl.BlockSpec((tm, tn), lambda j, i, k: (i, j)),
            scratch_shapes=[pltpu.VMEM((tm, 2 * tn), jnp.float32)],
        )
        kernel = _bilinear_gated_kernel_reduce

    out = pl.pallas_call(
        kernel,
        out_shape=jax.ShapeDtypeStruct((Bp, Np), x.dtype),
        grid_spec=grid_spec,
        compiler_params=compiler_params,
        cost_estimate=cost,
    )(xp, w_fused)

    # Strip padding.
    return out[:B, :N]


if __name__ == "__main__":
    # Small shapes consistent with the module: batch=8, in_features=32, out_features=64.
    B, IN_F, OUT_F = 8, 32, 64

    key = jax.random.PRNGKey(0)
    kx, kt, kg = jax.random.split(key, 3)

    x = jax.random.normal(kx, (B, IN_F), dtype=jnp.float32)
    # PyTorch Linear weight layout: [out_features, in_features].
    bound = 1.0 / (IN_F ** 0.5)
    w_transform = jax.random.uniform(kt, (OUT_F, IN_F), jnp.float32, -bound, bound)
    w_gate = jax.random.uniform(kg, (OUT_F, IN_F), jnp.float32, -bound, bound)

    # One-time parameter prep (transpose + fuse + pad + bf16 cast), then the kernel.
    w_fused, meta = prepare_params(w_transform, w_gate)
    out = bilinear_gated_fc(x, w_fused, meta)
    out = jax.block_until_ready(out)
    assert out.shape == (B, OUT_F)

    # Reference applying the same bf16 rounding the kernel uses (tight check).
    xb = x.astype(jnp.bfloat16).astype(jnp.float32)
    wtb = w_transform.astype(jnp.bfloat16).astype(jnp.float32)
    wgb = w_gate.astype(jnp.bfloat16).astype(jnp.float32)
    ref = (xb @ wtb.T) * (xb @ wgb.T)
    assert jnp.allclose(out, ref, atol=1e-3, rtol=1e-3), "mismatch vs bf16 reference"

    # Coarse sanity check against the full-precision module output.
    ref_f32 = (x @ w_transform.T) * (x @ w_gate.T)
    assert jnp.allclose(out, ref_f32, atol=1e-1, rtol=1e-1), "mismatch vs f32 reference"

    print("KERNEL_OK")
</pallas_src>

<mosaic_0001>
module attributes {stable_mosaic.version = 11 : i64} {
  func.func @_bilinear_gated_kernel_single(%arg0: i32, %arg1: i32, %arg2: memref<8x128xf32, #tpu.memory_space<vmem>>, %arg3: memref<128x256xbf16, #tpu.memory_space<vmem>>, %arg4: memref<8x128xf32, #tpu.memory_space<vmem>>) attributes {dimension_semantics = [#tpu.dimension_semantics<parallel>, #tpu.dimension_semantics<parallel>], iteration_bounds = array<i64: 1, 1>, scalar_prefetch = 0 : i64, scratch_operands = 0 : i64, tpu.core_type = #tpu.core_type<tc>, window_params = [{transform_indices = @transform_0, window_bounds = array<i64: 8, 128>}, {transform_indices = @transform_1, window_bounds = array<i64: 128, 256>}, {transform_indices = @transform_2, window_bounds = array<i64: 8, 128>}]} {
    %c0 = arith.constant 0 : index
    %c0_0 = arith.constant 0 : index
    %0 = vector.load %arg2[%c0, %c0_0] : memref<8x128xf32, #tpu.memory_space<vmem>>, vector<8x128xf32>
    %1 = arith.truncf %0 : vector<8x128xf32> to vector<8x128xbf16>
    %c0_1 = arith.constant 0 : index
    %c0_2 = arith.constant 0 : index
    %2 = vector.load %arg3[%c0_1, %c0_2] : memref<128x256xbf16, #tpu.memory_space<vmem>>, vector<128x256xbf16>
    %cst = arith.constant dense<0.000000e+00> : vector<8x256xf32>
    %3 = tpu.matmul %1, %2, %cst {dimension_numbers = #tpu.dot_dimension_numbers<[1], [0], [0], [1], [0, 0, 1, 1], [], []>} : vector<8x128xbf16>, vector<128x256xbf16>, vector<8x256xf32> -> vector<8x256xf32>
    %4 = vector.extract_strided_slice %3 {offsets = [0, 0], sizes = [8, 128], strides = [1, 1]} : vector<8x256xf32> to vector<8x128xf32>
    %5 = vector.extract_strided_slice %3 {offsets = [0, 128], sizes = [8, 128], strides = [1, 1]} : vector<8x256xf32> to vector<8x128xf32>
    %6 = arith.mulf %4, %5 : vector<8x128xf32>
    %c0_3 = arith.constant 0 : index
    %c0_4 = arith.constant 0 : index
    %7 = vector.load %arg4[%c0_3, %c0_4] : memref<8x128xf32, #tpu.memory_space<vmem>>, vector<8x128xf32>
    tpu.vector_store %arg4[%c0_3, %c0_4], %6 {strides = array<i32>} : memref<8x128xf32, #tpu.memory_space<vmem>>, vector<8x128xf32>,
    return
  }
  func.func @transform_0(%arg0: i32, %arg1: i32) -> (i32, i32) {
    %c0_i32 = arith.constant 0 : i32
    %c0_i32_0 = arith.constant 0 : i32
    return %arg1, %c0_i32 : i32, i32
  }
  func.func @transform_1(%arg0: i32, %arg1: i32) -> (i32, i32) {
    %c0_i32 = arith.constant 0 : i32
    %c0_i32_0 = arith.constant 0 : i32
    return %c0_i32, %arg0 : i32, i32
  }
  func.func @transform_2(%arg0: i32, %arg1: i32) -> (i32, i32) {
    %c0_i32 = arith.constant 0 : i32
    return %arg1, %arg0 : i32, i32
  }
}

</mosaic_0001>

<llo_original>
// kernel: tpu_custom_call.1
$region0: #{tpu_custom_call.1}
  #allocation0 [shape = 'u32[]', space=smem, size = 0x4, offset = 0x4, fixed_abs, tag = 'smem constant byte address 0x4 - core index']
  #allocation1 [shape = 'u32[144,128]{1,0:T(1,128)}', space=vmem, size = 0x12000, scoped, tag = 'internal scratch']
  %s0 = inlined_call_operand.hbm [shape: f32[8,128], index: 0, kind: input, shape index: {}]
  %s1 = inlined_call_operand.hbm [shape: bf16[128,256], index: 1, kind: input, shape index: {}]
  %s2 = inlined_call_operand.hbm [shape: f32[8,128], index: 2, kind: output, shape index: {}]
  %s3 = sld [smem:[#allocation0]]
  $region26: #{tpu_custom_call.1} parent=0
    _
  %s5 = ssub.s32 1, %s3
  %s6 = scalar_select 0, %s5, %s3
  $region1: #{tpu_custom_call.1} parent=0
    #allocation2 [shape = 'u8[4096]{0}', space=vmem, size = 0x1000, scoped, tag = 'input window, operand 0, single buffered']
    #allocation3 [shape = 's32[1]{0}', space=sflag, size = 0x4, scoped, tag = 'scoped memory for tpu_custom_call.1']
    #allocation4 [shape = 's32[1]{0}', space=sflag, size = 0x4, scoped, tag = 'scoped memory for tpu_custom_call.1']
    #allocation5 [shape = 'u8[65536]{0}', space=vmem, size = 0x10000, scoped, tag = 'input window, operand 1, single buffered']
    #allocation6 [shape = 's32[1]{0}', space=sflag, size = 0x4, scoped, tag = 'scoped memory for tpu_custom_call.1']
    #allocation7 [shape = 'u8[4096]{0}', space=vmem, size = 0x1000, scoped, tag = 'output window, operand 0, single buffered']
    %7 = vsyncpa [#allocation3], 0
    %8 = vsyncpa [#allocation6], 0
    %9 = vsyncpa [#allocation4], 0
    // Predicated region
    $region2: #{tpu_custom_call.1} parent=1 // pred_check
      _
    $region3: #{tpu_custom_call.1} parent=1 // pred_check_branch
      %11 = sbr.rel (0) target = $region5
    $region4: #{tpu_custom_call.1} parent=1 // pred_region
      %s13 = ssub.s32 128, 128
      %14 = vsyncadd [#allocation3], %s13
      %s16 = sshll.u32 [#allocation2], 4
      %s17 = int_to_ptr.vmem [resolvable:$true] %s16
      %19 = dma.hbm_to_vmem [thread:$0]  %s0, 128, %s17, [#allocation3]
    $region5: #{tpu_custom_call.1} parent=1 // pred_fallthru
      _
    // Predicated region
    $region6: #{tpu_custom_call.1} parent=1 // pred_check
      _
    $region7: #{tpu_custom_call.1} parent=1 // pred_check_branch
      %21 = sbr.rel (0) target = $region9
    $region8: #{tpu_custom_call.1} parent=1 // pred_region
      %s23 = ssub.s32 2048, 2048
      %24 = vsyncadd [#allocation6], %s23
      %s25 = sshll.u32 [#allocation5], 4
      %s26 = int_to_ptr.vmem [resolvable:$true] %s25
      %31 = dma.hbm_to_vmem [thread:$0]  %s1, 2048, %s26, [#allocation6], 128, 128, 8
    $region9: #{tpu_custom_call.1} parent=1 // pred_fallthru
      _
    // Predicated region
    $region10: #{tpu_custom_call.1} parent=1 // pred_check
      _
    $region11: #{tpu_custom_call.1} parent=1 // pred_check_branch
      %33 = sbr.rel (0) target = $region13
    $region12: #{tpu_custom_call.1} parent=1 // pred_region
      %34 = dma.done [#allocation3], 128
    $region13: #{tpu_custom_call.1} parent=1 // pred_fallthru
      _
    // Predicated region
    $region14: #{tpu_custom_call.1} parent=1 // pred_check
      _
    $region15: #{tpu_custom_call.1} parent=1 // pred_check_branch
      %36 = sbr.rel (0) target = $region17
    $region16: #{tpu_custom_call.1} parent=1 // pred_region
      %37 = dma.done [#allocation6], 2048
    $region17: #{tpu_custom_call.1} parent=1 // pred_fallthru
      _
    %v39 = vld [vmem:[#allocation2] sm:$0xff]
    %v40 = vpack.c.bf16 %v39, %v39
    %v41 = vld [vmem:[#allocation5] sm:$0xff]
    %v42 = vld [vmem:[#allocation5 + $0x8] sm:$0xff]
    %v43 = vld [vmem:[#allocation5 + $0x10] sm:$0xff]
    %v44 = vld [vmem:[#allocation5 + $0x18] sm:$0xff]
    %v45 = vld [vmem:[#allocation5 + $0x20] sm:$0xff]
    %v46 = vld [vmem:[#allocation5 + $0x28] sm:$0xff]
    %v47 = vld [vmem:[#allocation5 + $0x30] sm:$0xff]
    %v48 = vld [vmem:[#allocation5 + $0x38] sm:$0xff]
    %v49 = vld [vmem:[#allocation5 + $0x40] sm:$0xff]
    %v50 = vld [vmem:[#allocation5 + $0x48] sm:$0xff]
    %v51 = vld [vmem:[#allocation5 + $0x50] sm:$0xff]
    %v52 = vld [vmem:[#allocation5 + $0x58] sm:$0xff]
    %v53 = vld [vmem:[#allocation5 + $0x60] sm:$0xff]
    %v54 = vld [vmem:[#allocation5 + $0x68] sm:$0xff]
    %v55 = vld [vmem:[#allocation5 + $0x70] sm:$0xff]
    %v56 = vld [vmem:[#allocation5 + $0x78] sm:$0xff]
    %v73 = vunpack.c.l.b16 %v41
    %v74 = vunpack.c.h.b16 %v41
    %v75 = vunpack.c.l.b16 %v42
    %v76 = vunpack.c.h.b16 %v42
    %v77 = vunpack.c.l.b16 %v43
    %v78 = vunpack.c.h.b16 %v43
    %v79 = vunpack.c.l.b16 %v44
    %v80 = vunpack.c.h.b16 %v44
    %v81 = vunpack.c.l.b16 %v45
    %v82 = vunpack.c.h.b16 %v45
    %v83 = vunpack.c.l.b16 %v46
    %v84 = vunpack.c.h.b16 %v46
    %v85 = vunpack.c.l.b16 %v47
    %v86 = vunpack.c.h.b16 %v47
    %v87 = vunpack.c.l.b16 %v48
    %v88 = vunpack.c.h.b16 %v48
    %v89 = vunpack.c.l.b16 %v49
    %v90 = vunpack.c.h.b16 %v49
    %v91 = vunpack.c.l.b16 %v50
    %v92 = vunpack.c.h.b16 %v50
    %v93 = vunpack.c.l.b16 %v51
    %v94 = vunpack.c.h.b16 %v51
    %v95 = vunpack.c.l.b16 %v52
    %v96 = vunpack.c.h.b16 %v52
    %v97 = vunpack.c.l.b16 %v53
    %v98 = vunpack.c.h.b16 %v53
    %v99 = vunpack.c.l.b16 %v54
    %v100 = vunpack.c.h.b16 %v54
    %v101 = vunpack.c.l.b16 %v55
    %v102 = vunpack.c.h.b16 %v55
    %v103 = vunpack.c.l.b16 %v56
    %v104 = vunpack.c.h.b16 %v56
    %v105 = vpack.c.b16 %v75, %v73
    %v106 = vpack.c.b16 %v76, %v74
    %v107 = vpack.c.b16 %v79, %v77
    %v108 = vpack.c.b16 %v80, %v78
    %v109 = vpack.c.b16 %v83, %v81
    %v110 = vpack.c.b16 %v84, %v82
    %v111 = vpack.c.b16 %v87, %v85
    %v112 = vpack.c.b16 %v88, %v86
    %v113 = vpack.c.b16 %v91, %v89
    %v114 = vpack.c.b16 %v92, %v90
    %v115 = vpack.c.b16 %v95, %v93
    %v116 = vpack.c.b16 %v96, %v94
    %v117 = vpack.c.b16 %v99, %v97
    %v118 = vpack.c.b16 %v100, %v98
    %v119 = vpack.c.b16 %v103, %v101
    %v120 = vpack.c.b16 %v104, %v102
    %137 = vmatprep.subr.bf16.mxu0 %v120
    %138 = vmatpush1.bf16.msra.mxu0 %v119
    %139 = vmatprep.subr.bf16.mxu0 %v118
    %140 = vmatpush1.bf16.msra.mxu0 %v117
    %141 = vmatprep.subr.bf16.mxu0 %v116
    %142 = vmatpush1.bf16.msra.mxu0 %v115
    %143 = vmatprep.subr.bf16.mxu0 %v114
    %144 = vmatpush1.bf16.msra.mxu0 %v113
    %145 = vmatprep.subr.bf16.mxu0 %v112
    %146 = vmatpush1.bf16.msra.mxu0 %v111
    %147 = vmatprep.subr.bf16.mxu0 %v110
    %148 = vmatpush1.bf16.msra.mxu0 %v109
    %149 = vmatprep.subr.bf16.mxu0 %v108
    %150 = vmatpush1.bf16.msra.mxu0 %v107
    %151 = vmatprep.subr.bf16.mxu0 %v106
    %152 = vmatpush1.bf16.msra.mxu0 %v105
    %153 = vmatprep.subr.bf16.mxu0 0
    %154 = vmatpush2.bf16.msra.mxu0 0
    %155 = vmatprep.subr.bf16.mxu0 0
    %156 = vmatpush2.bf16.msra.mxu0 0
    %157 = vmatprep.subr.bf16.mxu0 0
    %158 = vmatpush2.bf16.msra.mxu0 0
    %159 = vmatprep.subr.bf16.mxu0 0
    %160 = vmatpush2.bf16.msra.mxu0 0
    %161 = vmatprep.subr.bf16.mxu0 0
    %162 = vmatpush2.bf16.msra.mxu0 0
    %163 = vmatprep.subr.bf16.mxu0 0
    %164 = vmatpush2.bf16.msra.mxu0 0
    %165 = vmatprep.subr.bf16.mxu0 0
    %166 = vmatpush2.bf16.msra.mxu0 0
    %167 = vmatprep.subr.bf16.mxu0 0
    %168 = vmatpush2.bf16.msra.mxu0 0
    %169 = vmatprep.mubr.bf16.mxu0 0
    %170 = vmatmul.mubr.bf16.gmra.mxu0 %v40
    %v171 = vpop.f32.mrf.mxu0
    %v172 = vadd.f32 0.0, %v171
    %v173 = vpop.f32.mrf.mxu0
    %v174 = vadd.f32 0.0, %v173
    %v175 = vpop.f32.mrf.mxu0
    %v176 = vpop.f32.mrf.mxu0
    %177 = vdwg.mxu0
    %v178 = vmul.f32 %v172, %v174
    %179 = vst [vmem:[#allocation7] sm:$0xff] %v178
    // Predicated region
    $region18: #{tpu_custom_call.1} parent=1 // pred_check
      _
    $region19: #{tpu_custom_call.1} parent=1 // pred_check_branch
      %181 = sbr.rel (0) target = $region21
    $region20: #{tpu_custom_call.1} parent=1 // pred_region
      %s183 = ssub.s32 128, 128
      %184 = vsyncadd [#allocation4], %s183
      %s186 = sshll.u32 [#allocation7], 4
      %s187 = int_to_ptr.vmem [resolvable:$true] %s186
      %189 = dma.vmem_to_hbm [thread:$0]  %s187, 128, %s2, [#allocation4]
    $region21: #{tpu_custom_call.1} parent=1 // pred_fallthru
      _
    // Predicated region
    $region22: #{tpu_custom_call.1} parent=1 // pred_check
      _
    $region23: #{tpu_custom_call.1} parent=1 // pred_check_branch
      %191 = sbr.rel (0) target = $region25
    $region24: #{tpu_custom_call.1} parent=1 // pred_region
      %192 = dma.done [#allocation4], 128
    $region25: #{tpu_custom_call.1} parent=1 // pred_fallthru
      _
    %193 = vsyncpa [#allocation3], 1
    %194 = vsyncpa [#allocation6], 1
    %195 = vsyncpa [#allocation4], 1

</llo_original>
